<compile_context>
chip_gen: v7x
topology: tpu7x:2x2x1
jax: 0.10.0
libtpu: 0.0.40
codegen_flags: <defaults>
</compile_context>

<pallas_src>
import functools

import jax
import jax.numpy as jnp
from jax import lax
from jax.experimental import pallas as pl
from jax.experimental.pallas import tpu as pltpu

EPS = 1e-8          # torch F.cosine_similarity default eps
EPS2 = EPS * EPS    # clamp on the product of squared norms


def _detect_num_tensorcores():
    """Best-effort TensorCore-per-chip count; conservative fallback of 1."""
    try:
        info = pltpu.get_tpu_info()
    except Exception:
        return 1
    for name in ("num_cores", "core_count", "num_tensorcores",
                 "tensorcore_count", "num_cores_per_chip", "cores_per_chip"):
        n = getattr(info, name, None)
        if isinstance(n, int) and not isinstance(n, bool) and 1 <= n <= 2:
            return n
    return 1


def _round_up(n, m):
    return (n + m - 1) // m * m


def _align_loss_kernel(x_ref, y_ref, out_ref, acc_ref, *,
                       total_rows, tile_b, tiles_per_core):
    c = pl.program_id(0)   # core-split axis
    i = pl.program_id(1)   # batch-tile reduction axis

    # (Re-)initialize this core's accumulator at the start of its sweep.
    @pl.when(i == 0)
    def _():
        acc_ref[...] = jnp.zeros_like(acc_ref)

    x = x_ref[...].astype(jnp.float32)   # (tile_b, D)
    y = y_ref[...].astype(jnp.float32)   # (tile_b, D)

    # Row-wise cosine similarity, reduced over the feature (lane) axis.
    dot = jnp.sum(x * y, axis=-1, keepdims=True)   # (tile_b, 1)
    sx = jnp.sum(x * x, axis=-1, keepdims=True)    # (tile_b, 1)
    sy = jnp.sum(y * y, axis=-1, keepdims=True)    # (tile_b, 1)
    # torch: dot / max(||x||*||y||, eps) == dot * rsqrt(max(sx*sy, eps^2))
    cos = dot * lax.rsqrt(jnp.maximum(sx * sy, EPS2))

    # Mask rows past the true batch: tail-tile padding and (multi-core only)
    # out-of-range tiles whose block index was clamped in the index_map.
    # Keep this a where/select so padded-row NaN/Inf cannot leak.
    row_start = (c * tiles_per_core + i) * tile_b
    row_ids = lax.broadcasted_iota(jnp.int32, (tile_b, 1), 0) + row_start
    cos = jnp.where(row_ids < total_rows, cos, 0.0)

    # Lane-dense single-vreg accumulator: tile reduced to a scalar (free
    # filler under memory slack), broadcast-added into one (8,128) vreg.
    acc_ref[...] = acc_ref[...] + jnp.sum(cos)

    # Epilogue: write this core's partial sum (replicated over the slab).
    @pl.when(i == pl.num_programs(1) - 1)
    def _():
        out_ref[...] = acc_ref[...]


def align_loss(x, y, *, tile_b=None, num_cores=None,
               target_block_bytes=2 << 20,
               vmem_limit_bytes=32 * 1024 * 1024):
    """AlignLoss forward (cos-sim, x->y, no predictors).  x, y: [B, D]."""
    assert x.shape == y.shape, f"x.shape: {x.shape}, y.shape: {y.shape}"
    B, D = x.shape
    itemsize = jnp.dtype(x.dtype).itemsize

    # Largest sublane-aligned batch tile such that double-buffered input
    # blocks plus their f32 upcast temporaries stay well inside scoped VMEM.
    # TODO(synk): tile D as a second reduction axis (partial dot/sx/sy
    # accumulators) if D ever gets so large that a single (8, D) row-block
    # blows the VMEM budget; for typical feat_dim this is unnecessary.
    if tile_b is None:
        rows = max(8, (target_block_bytes // max(1, D * itemsize)) // 8 * 8)
        tile_b = min(rows, _round_up(B, 8))
    tile_b = int(tile_b)

    num_tiles = pl.cdiv(B, tile_b)

    # Core split only where it is real: auto-detect TC count (fallback 1) and
    # never split finer than the number of tiles.
    if num_cores is None:
        num_cores = _detect_num_tensorcores()
    num_cores = max(1, min(int(num_cores), num_tiles))
    tiles_per_core = pl.cdiv(num_tiles, num_cores)

    def in_index_map(c, i):
        # Clamp so tiles assigned past the end of the batch stay in bounds;
        # their rows are masked out inside the kernel (multi-core only).
        return (jnp.minimum(c * tiles_per_core + i, num_tiles - 1), 0)

    kernel = functools.partial(
        _align_loss_kernel,
        total_rows=B, tile_b=tile_b, tiles_per_core=tiles_per_core)

    # CORE_PARALLEL is what actually shards a grid axis across TensorCores;
    # on single-TC chips the leading axis has size 1 and costs nothing.
    lead_sem = pltpu.CORE_PARALLEL if num_cores > 1 else pltpu.PARALLEL

    out = pl.pallas_call(
        kernel,
        out_shape=jax.ShapeDtypeStruct((num_cores * 8, 128), jnp.float32),
        grid_spec=pltpu.PrefetchScalarGridSpec(
            num_scalar_prefetch=0,
            grid=(num_cores, tiles_per_core),
            in_specs=[
                pl.BlockSpec((tile_b, D), in_index_map),
                pl.BlockSpec((tile_b, D), in_index_map),
            ],
            out_specs=pl.BlockSpec((8, 128), lambda c, i: (c, 0)),
            scratch_shapes=[pltpu.VMEM((8, 128), jnp.float32)],
        ),
        compiler_params=pltpu.CompilerParams(
            dimension_semantics=(lead_sem, pltpu.ARBITRARY),
            vmem_limit_bytes=vmem_limit_bytes,
        ),
    )(x, y)

    per_core_sums = out.reshape(num_cores, 8, 128)[:, 0, 0]
    return 1.0 - jnp.sum(per_core_sums) / jnp.float32(B)


def _align_loss_ref(x, y):
    x = x.astype(jnp.float32)
    y = y.astype(jnp.float32)
    dot = jnp.sum(x * y, axis=-1)
    sx = jnp.sum(x * x, axis=-1)
    sy = jnp.sum(y * y, axis=-1)
    cos = dot / jnp.maximum(jnp.sqrt(sx * sy), EPS)   # product-clamped eps
    return 1.0 - jnp.mean(cos)


if __name__ == "__main__":
    key = jax.random.PRNGKey(0)

    # Case 1: small aligned shapes ([B, feat_dim]=512 like the module default),
    # f32, auto tile / auto core count.
    B, D = 16, 512
    kx, ky = jax.random.split(key)
    x = jax.random.normal(kx, (B, D), dtype=jnp.float32)
    y = jax.random.normal(ky, (B, D), dtype=jnp.float32)
    loss = jax.block_until_ready(align_loss(x, y))
    ref = jax.block_until_ready(_align_loss_ref(x, y))
    assert jnp.allclose(loss, ref, atol=1e-5, rtol=1e-5), (loss, ref)

    # Case 2: ragged batch + forced small tile, bf16 inputs.  Exercises the
    # tail-row mask and the bf16 DMA + in-kernel f32 upcast path.
    B2, D2 = 40, 256
    kx2, ky2 = jax.random.split(ky)
    x2 = jax.random.normal(kx2, (B2, D2), dtype=jnp.float32).astype(jnp.bfloat16)
    y2 = jax.random.normal(ky2, (B2, D2), dtype=jnp.float32).astype(jnp.bfloat16)
    loss2 = jax.block_until_ready(align_loss(x2, y2, tile_b=16))
    ref2 = jax.block_until_ready(_align_loss_ref(x2, y2))
    assert jnp.allclose(loss2, ref2, atol=1e-4, rtol=1e-4), (loss2, ref2)

    print("KERNEL_OK")
</pallas_src>

<mosaic_0001>
module attributes {stable_mosaic.version = 11 : i64} {
  func.func @_align_loss_kernel(%arg0: i32, %arg1: i32, %arg2: memref<16x512xf32, #tpu.memory_space<vmem>>, %arg3: memref<16x512xf32, #tpu.memory_space<vmem>>, %arg4: memref<8x128xf32, #tpu.memory_space<vmem>>, %arg5: memref<8x128xf32, #tpu.memory_space<vmem>>) attributes {dimension_semantics = [#tpu.dimension_semantics<parallel>, #tpu.dimension_semantics<arbitrary>], iteration_bounds = array<i64: 1, 1>, scalar_prefetch = 0 : i64, scratch_operands = 1 : i64, tpu.core_type = #tpu.core_type<tc>, window_params = [{transform_indices = @transform_0, window_bounds = array<i64: 16, 512>}, {transform_indices = @transform_1, window_bounds = array<i64: 16, 512>}, {transform_indices = @transform_2, window_bounds = array<i64: 8, 128>}]} {
    %c0_i32 = arith.constant 0 : i32
    %0 = arith.cmpi eq, %arg1, %c0_i32 : i32
    %1 = arith.extui %0 : i1 to i32
    %c0_i32_0 = arith.constant 0 : i32
    %2 = arith.cmpi ne, %1, %c0_i32_0 : i32
    scf.if %2 {
      %cst_16 = arith.constant 0.000000e+00 : f32
      %40 = vector.broadcast %cst_16 : f32 to vector<8x128xf32>
      %c0_17 = arith.constant 0 : index
      %c0_18 = arith.constant 0 : index
      %41 = vector.load %arg5[%c0_17, %c0_18] : memref<8x128xf32, #tpu.memory_space<vmem>>, vector<8x128xf32>
      tpu.vector_store %arg5[%c0_17, %c0_18], %40 {strides = array<i32>} : memref<8x128xf32, #tpu.memory_space<vmem>>, vector<8x128xf32>,
    } else {
    }
    %c0 = arith.constant 0 : index
    %c0_1 = arith.constant 0 : index
    %3 = vector.load %arg2[%c0, %c0_1] : memref<16x512xf32, #tpu.memory_space<vmem>>, vector<16x512xf32>
    %c0_2 = arith.constant 0 : index
    %c0_3 = arith.constant 0 : index
    %4 = vector.load %arg3[%c0_2, %c0_3] : memref<16x512xf32, #tpu.memory_space<vmem>>, vector<16x512xf32>
    %5 = arith.mulf %3, %4 : vector<16x512xf32>
    %cst = arith.constant dense<0.000000e+00> : vector<16xf32>
    %6 = vector.multi_reduction <add>, %5, %cst [1] : vector<16x512xf32> to vector<16xf32>
    %7 = vector.shape_cast %6 : vector<16xf32> to vector<16x1xf32>
    %8 = arith.mulf %3, %3 : vector<16x512xf32>
    %cst_4 = arith.constant dense<0.000000e+00> : vector<16xf32>
    %9 = vector.multi_reduction <add>, %8, %cst_4 [1] : vector<16x512xf32> to vector<16xf32>
    %10 = vector.shape_cast %9 : vector<16xf32> to vector<16x1xf32>
    %11 = arith.mulf %4, %4 : vector<16x512xf32>
    %cst_5 = arith.constant dense<0.000000e+00> : vector<16xf32>
    %12 = vector.multi_reduction <add>, %11, %cst_5 [1] : vector<16x512xf32> to vector<16xf32>
    %13 = vector.shape_cast %12 : vector<16xf32> to vector<16x1xf32>
    %14 = arith.mulf %10, %13 : vector<16x1xf32>
    %cst_6 = arith.constant 1.000000e-16 : f32
    %15 = vector.broadcast %cst_6 : f32 to vector<16x1xf32>
    %16 = arith.maximumf %14, %15 : vector<16x1xf32>
    %17 = math.rsqrt %16 : vector<16x1xf32>
    %18 = arith.mulf %7, %17 : vector<16x1xf32>
    %c1_i32 = arith.constant 1 : i32
    %19 = arith.muli %arg0, %c1_i32 : i32
    %20 = arith.addi %19, %arg1 : i32
    %c16_i32 = arith.constant 16 : i32
    %21 = arith.muli %20, %c16_i32 : i32
    %22 = tpu.iota {dimensions = array<i32: 0>} : vector<16x1xi32>
    %23 = vector.broadcast %21 : i32 to vector<16x1xi32>
    %24 = arith.addi %22, %23 : vector<16x1xi32>
    %c16_i32_7 = arith.constant 16 : i32
    %25 = vector.broadcast %c16_i32_7 : i32 to vector<16x1xi32>
    %26 = arith.cmpi slt, %24, %25 : vector<16x1xi32>
    %cst_8 = arith.constant 0.000000e+00 : f32
    %27 = vector.broadcast %cst_8 : f32 to vector<16x1xf32>
    %28 = arith.select %26, %18, %27 : vector<16x1xi1>, vector<16x1xf32>
    %c0_9 = arith.constant 0 : index
    %c0_10 = arith.constant 0 : index
    %29 = vector.load %arg5[%c0_9, %c0_10] : memref<8x128xf32, #tpu.memory_space<vmem>>, vector<8x128xf32>
    %30 = vector.shape_cast %28 : vector<16x1xf32> to vector<1x16x1xf32>
    %cst_11 = arith.constant dense<0.000000e+00> : vector<1xf32>
    %31 = vector.multi_reduction <add>, %30, %cst_11 [1, 2] : vector<1x16x1xf32> to vector<1xf32>
    %32 = vector.shape_cast %31 : vector<1xf32> to vector<1x1x1xf32>
    %33 = vector.extract %32[0, 0, 0] : f32 from vector<1x1x1xf32>
    %34 = vector.broadcast %33 : f32 to vector<8x128xf32>
    %35 = arith.addf %29, %34 : vector<8x128xf32>
    %c0_12 = arith.constant 0 : index
    %c0_13 = arith.constant 0 : index
    %36 = vector.load %arg5[%c0_12, %c0_13] : memref<8x128xf32, #tpu.memory_space<vmem>>, vector<8x128xf32>
    tpu.vector_store %arg5[%c0_12, %c0_13], %35 {strides = array<i32>} : memref<8x128xf32, #tpu.memory_space<vmem>>, vector<8x128xf32>,
    %c0_i32_14 = arith.constant 0 : i32
    %37 = arith.cmpi eq, %arg1, %c0_i32_14 : i32
    %38 = arith.extui %37 : i1 to i32
    %c0_i32_15 = arith.constant 0 : i32
    %39 = arith.cmpi ne, %38, %c0_i32_15 : i32
    scf.if %39 {
      %c0_16 = arith.constant 0 : index
      %c0_17 = arith.constant 0 : index
      %40 = vector.load %arg5[%c0_16, %c0_17] : memref<8x128xf32, #tpu.memory_space<vmem>>, vector<8x128xf32>
      %c0_18 = arith.constant 0 : index
      %c0_19 = arith.constant 0 : index
      %41 = vector.load %arg4[%c0_18, %c0_19] : memref<8x128xf32, #tpu.memory_space<vmem>>, vector<8x128xf32>
      tpu.vector_store %arg4[%c0_18, %c0_19], %40 {strides = array<i32>} : memref<8x128xf32, #tpu.memory_space<vmem>>, vector<8x128xf32>,
    } else {
    }
    return
  }
  func.func @transform_0(%arg0: i32, %arg1: i32) -> (i32, i32) {
    %c1_i32 = arith.constant 1 : i32
    %0 = arith.muli %arg0, %c1_i32 : i32
    %1 = arith.addi %0, %arg1 : i32
    %c0_i32 = arith.constant 0 : i32
    %2 = arith.minsi %1, %c0_i32 : i32
    %c0_i32_0 = arith.constant 0 : i32
    %c0_i32_1 = arith.constant 0 : i32
    return %2, %c0_i32_0 : i32, i32
  }
  func.func @transform_1(%arg0: i32, %arg1: i32) -> (i32, i32) {
    %c1_i32 = arith.constant 1 : i32
    %0 = arith.muli %arg0, %c1_i32 : i32
    %1 = arith.addi %0, %arg1 : i32
    %c0_i32 = arith.constant 0 : i32
    %2 = arith.minsi %1, %c0_i32 : i32
    %c0_i32_0 = arith.constant 0 : i32
    %c0_i32_1 = arith.constant 0 : i32
    return %2, %c0_i32_0 : i32, i32
  }
  func.func @transform_2(%arg0: i32, %arg1: i32) -> (i32, i32) {
    %c0_i32 = arith.constant 0 : i32
    %c0_i32_0 = arith.constant 0 : i32
    return %arg0, %c0_i32 : i32, i32
  }
}

</mosaic_0001>

<llo_original>
// kernel: tpu_custom_call.1
$region0: #{tpu_custom_call.1}
  #allocation0 [shape = 'u32[]', space=smem, size = 0x4, offset = 0x4, fixed_abs, tag = 'smem constant byte address 0x4 - core index']
  #allocation1 [shape = 'u32[144,128]{1,0:T(1,128)}', space=vmem, size = 0x12000, scoped, tag = 'internal scratch']
  #allocation2 [shape = 'f32[8,128]{1,0:T(8,128)}', space=vmem, size = 0x1000, scoped, tag = 'scratch operand']
  %s0 = inlined_call_operand.hbm [shape: f32[16,512], index: 0, kind: input, shape index: {}]
  %s1 = inlined_call_operand.hbm [shape: f32[16,512], index: 1, kind: input, shape index: {}]
  %s2 = inlined_call_operand.hbm [shape: f32[8,128], index: 2, kind: output, shape index: {}]
  %s3 = sld [smem:[#allocation0]]
  $region34: #{tpu_custom_call.1} parent=0
    _
  %s5 = ssub.s32 1, %s3
  %s6 = scalar_select 0, %s5, %s3
  $region1: #{tpu_custom_call.1} parent=0
    #allocation3 [shape = 'u8[32768]{0}', space=vmem, size = 0x8000, scoped, tag = 'input window, operand 0, single buffered']
    #allocation4 [shape = 's32[1]{0}', space=sflag, size = 0x4, scoped, tag = 'scoped memory for tpu_custom_call.1']
    #allocation5 [shape = 's32[1]{0}', space=sflag, size = 0x4, scoped, tag = 'scoped memory for tpu_custom_call.1']
    #allocation6 [shape = 'u8[32768]{0}', space=vmem, size = 0x8000, scoped, tag = 'input window, operand 1, single buffered']
    #allocation7 [shape = 's32[1]{0}', space=sflag, size = 0x4, scoped, tag = 'scoped memory for tpu_custom_call.1']
    #allocation8 [shape = 'u8[4096]{0}', space=vmem, size = 0x1000, scoped, tag = 'output window, operand 0, single buffered']
    %7 = vsyncpa [#allocation4], 0
    %8 = vsyncpa [#allocation7], 0
    %9 = vsyncpa [#allocation5], 0
    // Predicated region
    $region2: #{tpu_custom_call.1} parent=1 // pred_check
      _
    $region3: #{tpu_custom_call.1} parent=1 // pred_check_branch
      %11 = sbr.rel (0) target = $region5
    $region4: #{tpu_custom_call.1} parent=1 // pred_region
      %s12 = sadd.s32 0, 0
      %p13 = scmp.lt.s32.totalorder %s12, 0
      %s14 = scalar_select %p13, %s12, 0
      %s15 = smul.u32 2, %s14
      %s17 = ssub.s32 1024, 1024
      %18 = vsyncadd [#allocation4], %s17
      %s19 = smul.addr %s15, 4
      %s20 = smul.addr %s19, 128
      %s21 = scalar_lea.hbm %s0, %s20
      %s22 = sshll.u32 [#allocation3], 4
      %s23 = int_to_ptr.vmem [resolvable:$true] %s22
      %28 = dma.hbm_to_vmem [thread:$0]  %s21, 1024, %s23, [#allocation4], 512, 512, 32
    $region5: #{tpu_custom_call.1} parent=1 // pred_fallthru
      _
    // Predicated region
    $region6: #{tpu_custom_call.1} parent=1 // pred_check
      _
    $region7: #{tpu_custom_call.1} parent=1 // pred_check_branch
      %30 = sbr.rel (0) target = $region9
    $region8: #{tpu_custom_call.1} parent=1 // pred_region
      %s31 = sadd.s32 0, 0
      %p32 = scmp.lt.s32.totalorder %s31, 0
      %s33 = scalar_select %p32, %s31, 0
      %s34 = smul.u32 2, %s33
      %s36 = ssub.s32 1024, 1024
      %37 = vsyncadd [#allocation7], %s36
      %s38 = smul.addr %s34, 4
      %s39 = smul.addr %s38, 128
      %s40 = scalar_lea.hbm %s1, %s39
      %s41 = sshll.u32 [#allocation6], 4
      %s42 = int_to_ptr.vmem [resolvable:$true] %s41
      %47 = dma.hbm_to_vmem [thread:$0]  %s40, 1024, %s42, [#allocation7], 512, 512, 32
    $region9: #{tpu_custom_call.1} parent=1 // pred_fallthru
      _
    // Predicated region
    $region10: #{tpu_custom_call.1} parent=1 // pred_check
      _
    $region11: #{tpu_custom_call.1} parent=1 // pred_check_branch
      %49 = sbr.rel (0) target = $region13
    $region12: #{tpu_custom_call.1} parent=1 // pred_region
      %50 = dma.done [#allocation4], 1024
    $region13: #{tpu_custom_call.1} parent=1 // pred_fallthru
      _
    // Predicated region
    $region14: #{tpu_custom_call.1} parent=1 // pred_check
      _
    $region15: #{tpu_custom_call.1} parent=1 // pred_check_branch
      %52 = sbr.rel (0) target = $region17
    $region16: #{tpu_custom_call.1} parent=1 // pred_region
      %53 = dma.done [#allocation7], 1024
    $region17: #{tpu_custom_call.1} parent=1 // pred_fallthru
      _
    %s54 = sadd.s32 0, 0
    %p55 = scmp.lt.s32.totalorder %s54, 0
    %s56 = scalar_select %p55, %s54, 0
    %s57 = smul.u32 2, %s56
    %s58 = sadd.s32 0, 0
    %p59 = scmp.lt.s32.totalorder %s58, 0
    %s60 = scalar_select %p59, %s58, 0
    %s61 = smul.u32 2, %s60
    %p62 = scmp.eq.s32.totalorder 0, 0
    // Predicated region
    $region18: #{tpu_custom_call.1} parent=1 // pred_check
      %p63 = pneg %p62
    $region19: #{tpu_custom_call.1} parent=1 // pred_check_branch
      %65 = sbr.rel (%p63) target = $region21
    $region20: #{tpu_custom_call.1} parent=1 // pred_region
      %66 = vst [vmem:[#allocation2] sm:$0xff] 0.0
    $region21: #{tpu_custom_call.1} parent=1 // pred_fallthru
      _
    %v67 = vld [vmem:[#allocation3] sm:$0xff]
    %v68 = vld [vmem:[#allocation3 + $0x8] sm:$0xff]
    %v69 = vld [vmem:[#allocation3 + $0x10] sm:$0xff]
    %v70 = vld [vmem:[#allocation3 + $0x18] sm:$0xff]
    %v71 = vld [vmem:[#allocation3 + $0x20] sm:$0xff]
    %v72 = vld [vmem:[#allocation3 + $0x28] sm:$0xff]
    %v73 = vld [vmem:[#allocation3 + $0x30] sm:$0xff]
    %v74 = vld [vmem:[#allocation3 + $0x38] sm:$0xff]
    %v75 = vld [vmem:[#allocation6] sm:$0xff]
    %v76 = vld [vmem:[#allocation6 + $0x8] sm:$0xff]
    %v77 = vld [vmem:[#allocation6 + $0x10] sm:$0xff]
    %v78 = vld [vmem:[#allocation6 + $0x18] sm:$0xff]
    %v79 = vld [vmem:[#allocation6 + $0x20] sm:$0xff]
    %v80 = vld [vmem:[#allocation6 + $0x28] sm:$0xff]
    %v81 = vld [vmem:[#allocation6 + $0x30] sm:$0xff]
    %v82 = vld [vmem:[#allocation6 + $0x38] sm:$0xff]
    %v83 = vmul.f32 %v67, %v75
    %v84 = vmul.f32 %v68, %v76
    %v85 = vmul.f32 %v69, %v77
    %v86 = vmul.f32 %v70, %v78
    %v87 = vmul.f32 %v71, %v79
    %v88 = vmul.f32 %v72, %v80
    %v89 = vmul.f32 %v73, %v81
    %v90 = vmul.f32 %v74, %v82
    %v91 = vadd.f32 %v83, %v84
    %v92 = vadd.f32 %v91, %v85
    %v93 = vadd.f32 %v92, %v86
    %94 = vadd.xlane.f32.xlu0 %v93
    %v95 = vpop.xlane.xlu0 %94
    %v96 = vadd.f32 %v87, %v88
    %v97 = vadd.f32 %v96, %v89
    %v98 = vadd.f32 %v97, %v90
    %99 = vadd.xlane.f32.xlu0 %v98
    %v100 = vpop.xlane.xlu0 %99
    %v101 = vmul.f32 %v67, %v67
    %v102 = vmul.f32 %v68, %v68
    %v103 = vmul.f32 %v69, %v69
    %v104 = vmul.f32 %v70, %v70
    %v105 = vmul.f32 %v71, %v71
    %v106 = vmul.f32 %v72, %v72
    %v107 = vmul.f32 %v73, %v73
    %v108 = vmul.f32 %v74, %v74
    %v109 = vadd.f32 %v101, %v102
    %v110 = vadd.f32 %v109, %v103
    %v111 = vadd.f32 %v110, %v104
    %112 = vadd.xlane.f32.xlu0 %v111
    %v113 = vpop.xlane.xlu0 %112
    %v114 = vadd.f32 %v105, %v106
    %v115 = vadd.f32 %v114, %v107
    %v116 = vadd.f32 %v115, %v108
    %117 = vadd.xlane.f32.xlu0 %v116
    %v118 = vpop.xlane.xlu0 %117
    %v119 = vmul.f32 %v75, %v75
    %v120 = vmul.f32 %v76, %v76
    %v121 = vmul.f32 %v77, %v77
    %v122 = vmul.f32 %v78, %v78
    %v123 = vmul.f32 %v79, %v79
    %v124 = vmul.f32 %v80, %v80
    %v125 = vmul.f32 %v81, %v81
    %v126 = vmul.f32 %v82, %v82
    %v127 = vadd.f32 %v119, %v120
    %v128 = vadd.f32 %v127, %v121
    %v129 = vadd.f32 %v128, %v122
    %130 = vadd.xlane.f32.xlu0 %v129
    %v131 = vpop.xlane.xlu0 %130
    %v132 = vadd.f32 %v123, %v124
    %v133 = vadd.f32 %v132, %v125
    %v134 = vadd.f32 %v133, %v126
    %135 = vadd.xlane.f32.xlu0 %v134
    %v136 = vpop.xlane.xlu0 %135
    %v137 = vmul.f32 %v113, %v131
    %v138 = vmul.f32 %v118, %v136
    %v139 = vmax.f32 %v137, 1e-16
    %v140 = vmax.f32 %v138, 1e-16
    %v141 = vrsqrt.pop %v139
    %v142 = vrsqrt.pop %v140
    %v143 = vmul.f32 %v95, %v141
    %v144 = vmul.f32 %v100, %v142
    %s145 = sadd.s32 0, 0
    %s146 = smul.u32 %s145, 16
    %v147 = vlaneseq
    %v148 = vshrl.u32 %v147, 7
    %v149 = vadd.s32 %v148, 8
    %v150 = vstv %s146
    %v151 = vadd.s32 %v148, %v150
    %v152 = vadd.s32 %v149, %v150
    %vm153 = vcmp.lt.s32.totalorder %v151, 16
    %vm154 = vcmp.lt.s32.totalorder %v152, 16
    %v155 = vsel %vm153, %v143, 0.0
    %v156 = vsel %vm154, %v144, 0.0
    %v157 = vld [vmem:[#allocation2] sm:$0xff]
    %vm158 = vcmask 7168
    %v159 = vsel %vm158, %v155, 0.0
    %v160 = vsel %vm158, %v156, 0.0
    %v161 = vadd.f32 %v159, %v160
    %162 = vadd.xlane.f32.xlu0 %v161
    %v163 = vpop.xlane.xlu0 %162
    %v164 = vrot.slane %v163, 4
    %v165 = vadd.f32 %v163, %v164
    %v166 = vrot.slane %v165, 2
    %v167 = vadd.f32 %v165, %v166
    %v168 = vrot.slane %v167, 1
    %v169 = vadd.f32 %v167, %v168
    %s170 = vtos %v169
    %v171 = vstv %s170
    %v172 = vadd.f32 %v157, %v171
    %173 = vst [vmem:[#allocation2] sm:$0xff] %v172
    // Predicated region
    $region22: #{tpu_custom_call.1} parent=1 // pred_check
      %p174 = pneg %p62
    $region23: #{tpu_custom_call.1} parent=1 // pred_check_branch
      %176 = sbr.rel (%p174) target = $region25
    $region24: #{tpu_custom_call.1} parent=1 // pred_region
      %v177 = vld [vmem:[#allocation2] sm:$0xff]
      %178 = vst [vmem:[#allocation8] sm:$0xff] %v177
    $region25: #{tpu_custom_call.1} parent=1 // pred_fallthru
      _
    // Predicated region
    $region26: #{tpu_custom_call.1} parent=1 // pred_check
      _
    $region27: #{tpu_custom_call.1} parent=1 // pred_check_branch
      %180 = sbr.rel (0) target = $region29
    $region28: #{tpu_custom_call.1} parent=1 // pred_region
      %s182 = ssub.s32 128, 128
      %183 = vsyncadd [#allocation5], %s182
      %s185 = sshll.u32 [#allocation8], 4
      %s186 = int_to_ptr.vmem [resolvable:$true] %s185
      %188 = dma.vmem_to_hbm [thread:$0]  %s186, 128, %s2, [#allocation5]
    $region29: #{tpu_custom_call.1} parent=1 // pred_fallthru
      _
    // Predicated region
    $region30: #{tpu_custom_call.1} parent=1 // pred_check
      _
    $region31: #{tpu_custom_call.1} parent=1 // pred_check_branch
      %190 = sbr.rel (0) target = $region33
    $region32: #{tpu_custom_call.1} parent=1 // pred_region
      %191 = dma.done [#allocation5], 128
    $region33: #{tpu_custom_call.1} parent=1 // pred_fallthru
      _
    %192 = vsyncpa [#allocation4], 1
    %193 = vsyncpa [#allocation7], 1
    %194 = vsyncpa [#allocation5], 1

</llo_original>
